<compile_context>
chip_gen: v7x
topology: tpu7x:2x2x1
jax: 0.10.0
libtpu: 0.0.40
codegen_flags: <defaults>
</compile_context>

<pallas_src>
import jax
import jax.numpy as jnp
from jax.experimental import pallas as pl
from jax.experimental.pallas import tpu as pltpu


def _round_up(x, m):
    return (x + m - 1) // m * m


def _round_down(x, m):
    return x // m * m


def _choose_tile_n(n, d, c, target_bytes=2 << 20):
    """Rows per grid step: ~target_bytes of x per block, VMEM-safe, grid >= 2 if possible."""
    # Rows giving ~target_bytes of x traffic per grid step.
    rows = max(1, target_bytes // (4 * d))
    # Keep double-buffered x + out tiles comfortably under the 32 MiB VMEM cap.
    rows = min(rows, max(8, (12 << 20) // (4 * (d + c))))
    rows = max(8, _round_down(rows, 8))
    # Keep at least 2 grid steps when N allows it (v7x 2-TC sharding + DMA/compute overlap).
    if n >= 16:
        rows = min(rows, _round_up(pl.cdiv(n, 2), 8))
    if rows >= n:
        return n  # single full-extent block (legal for any n)
    return rows


def _linear_kernel(x_ref, w_ref, b_ref, o_ref):
    # x_ref: (TILE_N, D), w_ref: (D, C), b_ref: (1, C), o_ref: (TILE_N, C)
    acc = jnp.dot(x_ref[...], w_ref[...], preferred_element_type=jnp.float32)
    o_ref[...] = (acc + b_ref[...]).astype(o_ref.dtype)


def node_classification_output(inputs, weight, bias, *, target_block_bytes=2 << 20):
    """Pallas equivalent of nn.Linear(node_embedding_dim, num_classes).

    inputs: (N, D) float32
    weight: (C, D) float32  (PyTorch nn.Linear layout)
    bias:   (C,)   float32
    returns (N, C) float32
    """
    n, d = inputs.shape
    c = weight.shape[0]

    # One-time transpose to the canonical MXU [K, N] layout (costs C*D bytes, negligible vs N*D).
    w_t = jnp.transpose(weight)          # (D, C)
    b2 = bias.reshape(1, c)

    tile_n = _choose_tile_n(n, d, c, target_block_bytes)
    grid_n = pl.cdiv(n, tile_n)

    # VMEM budget: double-buffered x and out tiles, W counted as double-buffered too,
    # bias; cap at 32 MiB so v7x's 64 MiB per-TC VMEM keeps headroom.
    # Note: for huge C*D (> ~16 MiB of weights) a second grid axis tiling the class
    # dimension would be needed; node-classification heads are far below that.
    vmem_est = 4 * (2 * tile_n * d + 2 * tile_n * c + 2 * d * c + 2 * c)
    vmem_limit = int(min(max(2 * vmem_est, 4 << 20), 32 << 20))

    out = pl.pallas_call(
        _linear_kernel,
        out_shape=jax.ShapeDtypeStruct((n, c), inputs.dtype),
        grid=(grid_n,),
        in_specs=[
            pl.BlockSpec((tile_n, d), lambda i: (i, 0)),  # x: tiled over rows, ragged tail clipped
            pl.BlockSpec((d, c), lambda i: (0, 0)),        # W^T: VMEM-resident, full extent
            pl.BlockSpec((1, c), lambda i: (0, 0)),        # bias: VMEM-resident
        ],
        out_specs=pl.BlockSpec((tile_n, c), lambda i: (i, 0)),
        compiler_params=pltpu.CompilerParams(
            dimension_semantics=("parallel",),
            vmem_limit_bytes=vmem_limit,
        ),
    )(inputs, w_t, b2)

    return out


if __name__ == "__main__":
    # Small shapes consistent with the module.
    num_nodes = 8
    node_embedding_dim = 32
    num_classes = 16

    key = jax.random.PRNGKey(0)
    k_x, k_w, k_b = jax.random.split(key, 3)

    inputs = jax.random.normal(k_x, (num_nodes, node_embedding_dim), jnp.float32)
    # Deterministic parameter init (mimics nn.Linear uniform init bounds).
    bound = 1.0 / (node_embedding_dim ** 0.5)
    weight = jax.random.uniform(
        k_w, (num_classes, node_embedding_dim), jnp.float32, -bound, bound)
    bias = jax.random.uniform(k_b, (num_classes,), jnp.float32, -bound, bound)

    out = node_classification_output(inputs, weight, bias)
    out = jax.block_until_ready(out)

    # Reference check against plain-JAX linear (same semantics as PyTorch).
    ref = inputs @ weight.T + bias
    assert out.shape == (num_nodes, num_classes)
    assert jnp.allclose(out, ref, atol=1e-5, rtol=1e-5), "mismatch vs reference"

    print("KERNEL_OK")
</pallas_src>

<mosaic_0001>
module attributes {stable_mosaic.version = 11 : i64} {
  func.func @_linear_kernel(%arg0: i32, %arg1: memref<8x32xf32, #tpu.memory_space<vmem>>, %arg2: memref<32x16xf32, #tpu.memory_space<vmem>>, %arg3: memref<1x16xf32, #tpu.memory_space<vmem>>, %arg4: memref<8x16xf32, #tpu.memory_space<vmem>>) attributes {dimension_semantics = [#tpu.dimension_semantics<parallel>], iteration_bounds = array<i64: 1>, scalar_prefetch = 0 : i64, scratch_operands = 0 : i64, tpu.core_type = #tpu.core_type<tc>, window_params = [{transform_indices = @transform_0, window_bounds = array<i64: 8, 32>}, {pipeline_mode = #tpu.pipeline_mode<synchronous>, transform_indices = @transform_1, window_bounds = array<i64: 32, 16>}, {pipeline_mode = #tpu.pipeline_mode<synchronous>, transform_indices = @transform_2, window_bounds = array<i64: 1, 16>}, {transform_indices = @transform_3, window_bounds = array<i64: 8, 16>}]} {
    %c0 = arith.constant 0 : index
    %c0_0 = arith.constant 0 : index
    %0 = vector.load %arg1[%c0, %c0_0] : memref<8x32xf32, #tpu.memory_space<vmem>>, vector<8x32xf32>
    %c0_1 = arith.constant 0 : index
    %c0_2 = arith.constant 0 : index
    %1 = vector.load %arg2[%c0_1, %c0_2] : memref<32x16xf32, #tpu.memory_space<vmem>>, vector<32x16xf32>
    %cst = arith.constant dense<0.000000e+00> : vector<8x16xf32>
    %2 = tpu.matmul %0, %1, %cst {dimension_numbers = #tpu.dot_dimension_numbers<[1], [0], [0], [1], [0, 0, 1, 1], [], []>} : vector<8x32xf32>, vector<32x16xf32>, vector<8x16xf32> -> vector<8x16xf32>
    %c0_3 = arith.constant 0 : index
    %c0_4 = arith.constant 0 : index
    %3 = vector.load %arg3[%c0_3, %c0_4] : memref<1x16xf32, #tpu.memory_space<vmem>>, vector<1x16xf32>
    %4 = vector.broadcast %3 : vector<1x16xf32> to vector<8x16xf32>
    %5 = arith.addf %2, %4 : vector<8x16xf32>
    %c0_5 = arith.constant 0 : index
    %c0_6 = arith.constant 0 : index
    %6 = vector.load %arg4[%c0_5, %c0_6] : memref<8x16xf32, #tpu.memory_space<vmem>>, vector<8x16xf32>
    tpu.vector_store %arg4[%c0_5, %c0_6], %5 {strides = array<i32>} : memref<8x16xf32, #tpu.memory_space<vmem>>, vector<8x16xf32>,
    return
  }
  func.func @transform_0(%arg0: i32) -> (i32, i32) {
    %c0_i32 = arith.constant 0 : i32
    %c0_i32_0 = arith.constant 0 : i32
    return %arg0, %c0_i32 : i32, i32
  }
  func.func @transform_1(%arg0: i32) -> (i32, i32) {
    %c0_i32 = arith.constant 0 : i32
    %c0_i32_0 = arith.constant 0 : i32
    %c0_i32_1 = arith.constant 0 : i32
    return %c0_i32, %c0_i32_0 : i32, i32
  }
  func.func @transform_2(%arg0: i32) -> (i32, i32) {
    %c0_i32 = arith.constant 0 : i32
    %c0_i32_0 = arith.constant 0 : i32
    %c0_i32_1 = arith.constant 0 : i32
    return %c0_i32, %c0_i32_0 : i32, i32
  }
  func.func @transform_3(%arg0: i32) -> (i32, i32) {
    %c0_i32 = arith.constant 0 : i32
    %c0_i32_0 = arith.constant 0 : i32
    return %arg0, %c0_i32 : i32, i32
  }
}

</mosaic_0001>

<llo_original>
// kernel: tpu_custom_call.1
$region0: #{tpu_custom_call.1}
  #allocation0 [shape = 'u32[]', space=smem, size = 0x4, offset = 0x4, fixed_abs, tag = 'smem constant byte address 0x4 - core index']
  #allocation1 [shape = 'u32[144,128]{1,0:T(1,128)}', space=vmem, size = 0x12000, scoped, tag = 'internal scratch']
  %s0 = inlined_call_operand.vmem [shape: f32[8,32], index: 0, kind: input, shape index: {}]
  %s1 = inlined_call_operand.vmem [shape: f32[32,16], index: 1, kind: input, shape index: {}]
  %s2 = inlined_call_operand.vmem [shape: f32[1,16], index: 2, kind: input, shape index: {}]
  %s3 = inlined_call_operand.hbm [shape: f32[8,16], index: 3, kind: output, shape index: {}]
  %s4 = sld [smem:[#allocation0]]
  $region22: #{tpu_custom_call.1} parent=0
    _
  %s6 = ssub.s32 1, %s4
  %s7 = scalar_select 0, %s6, %s4
  $region1: #{tpu_custom_call.1} parent=0
    #allocation2 [shape = 'u8[4096]{0}', space=vmem, size = 0x1000, scoped, tag = 'output window, operand 0, single buffered']
    #allocation3 [shape = 's32[1]{0}', space=sflag, size = 0x4, scoped, tag = 'scoped memory for tpu_custom_call.1']
    %8 = vsyncpa [#allocation3], 0
    // Predicated region
    $region2: #{tpu_custom_call.1} parent=1 // pred_check
      _
    $region3: #{tpu_custom_call.1} parent=1 // pred_check_branch
      %10 = sbr.rel (0) target = $region5
    $region4: #{tpu_custom_call.1} parent=1 // pred_region
      _
    $region5: #{tpu_custom_call.1} parent=1 // pred_fallthru
      _
    // Predicated region
    $region6: #{tpu_custom_call.1} parent=1 // pred_check
      _
    $region7: #{tpu_custom_call.1} parent=1 // pred_check_branch
      %12 = sbr.rel (0) target = $region9
    $region8: #{tpu_custom_call.1} parent=1 // pred_region
      _
    $region9: #{tpu_custom_call.1} parent=1 // pred_fallthru
      _
    // Predicated region
    $region10: #{tpu_custom_call.1} parent=1 // pred_check
      _
    $region11: #{tpu_custom_call.1} parent=1 // pred_check_branch
      %14 = sbr.rel (0) target = $region13
    $region12: #{tpu_custom_call.1} parent=1 // pred_region
      _
    $region13: #{tpu_custom_call.1} parent=1 // pred_fallthru
      _
    %v15 = vld [vmem:[%s0] sm:$0xff]
    %v16 = vld [vmem:[%s1] sm:$0xff]
    %v17 = vld [vmem:[%s1 + $0x8] sm:$0xff]
    %v18 = vld [vmem:[%s1 + $0x10] sm:$0xff]
    %v19 = vld [vmem:[%s1 + $0x18] sm:$0xff]
    %v20 = vld [vmem:[%s2] sm:$0x1]
    %v22 = vlaneseq
    %v23 = vshrl.u32 %v22, 7
    %v24 = vsub.s32 0, %v23
    %v25 = vrot.slane %v20, %v24
    %vm27 = vcmask 261120
    %v29 = vsel %vm27, %v15, 0
    %31 = vmatprep.subr.mxu0 0.0
    %32 = vmatpush1.msra.mxu0 %v16
    %33 = vmatprep.subr.mxu0 0.0
    %34 = vmatpush1.msra.mxu0 %v17
    %35 = vmatprep.subr.mxu0 0.0
    %36 = vmatpush1.msra.mxu0 %v18
    %37 = vmatprep.subr.mxu0 0.0
    %38 = vmatpush1.msra.mxu0 %v19
    %39 = vmatprep.subr.mxu0 0.0
    %40 = vmatpush1.msra.mxu0 0.0
    %41 = vmatprep.subr.mxu0 0.0
    %42 = vmatpush1.msra.mxu0 0.0
    %43 = vmatprep.subr.mxu0 0.0
    %44 = vmatpush1.msra.mxu0 0.0
    %45 = vmatprep.subr.mxu0 0.0
    %46 = vmatpush1.msra.mxu0 0.0
    %47 = vmatprep.subr.mxu0 0.0
    %48 = vmatpush1.msra.mxu0 0.0
    %49 = vmatprep.subr.mxu0 0.0
    %50 = vmatpush1.msra.mxu0 0.0
    %51 = vmatprep.subr.mxu0 0.0
    %52 = vmatpush1.msra.mxu0 0.0
    %53 = vmatprep.subr.mxu0 0.0
    %54 = vmatpush1.msra.mxu0 0.0
    %55 = vmatprep.subr.mxu0 0.0
    %56 = vmatpush1.msra.mxu0 0.0
    %57 = vmatprep.subr.mxu0 0.0
    %58 = vmatpush1.msra.mxu0 0.0
    %59 = vmatprep.subr.mxu0 0.0
    %60 = vmatpush1.msra.mxu0 0.0
    %61 = vmatprep.subr.mxu0 0.0
    %62 = vmatpush1.msra.mxu0 0.0
    %63 = vmatprep.subr.mxu0 0.0
    %64 = vmatpush1.msra.mxu0 0.0
    %65 = vmatprep.subr.mxu0 0.0
    %66 = vmatpush1.msra.mxu0 0.0
    %67 = vmatprep.subr.mxu0 0.0
    %68 = vmatpush1.msra.mxu0 0.0
    %69 = vmatprep.subr.mxu0 0.0
    %70 = vmatpush1.msra.mxu0 0.0
    %71 = vmatprep.subr.mxu0 0.0
    %72 = vmatpush1.msra.mxu0 0.0
    %73 = vmatprep.subr.mxu0 0.0
    %74 = vmatpush1.msra.mxu0 0.0
    %75 = vmatprep.subr.mxu0 0.0
    %76 = vmatpush1.msra.mxu0 0.0
    %77 = vmatprep.subr.mxu0 0.0
    %78 = vmatpush1.msra.mxu0 0.0
    %79 = vmatprep.subr.mxu0 0.0
    %80 = vmatpush1.msra.mxu0 0.0
    %81 = vmatprep.subr.mxu0 0.0
    %82 = vmatpush1.msra.mxu0 0.0
    %83 = vmatprep.subr.mxu0 0.0
    %84 = vmatpush1.msra.mxu0 0.0
    %85 = vmatprep.subr.mxu0 0.0
    %86 = vmatpush1.msra.mxu0 0.0
    %87 = vmatprep.subr.mxu0 0.0
    %88 = vmatpush1.msra.mxu0 0.0
    %89 = vmatprep.subr.mxu0 0.0
    %90 = vmatpush1.msra.mxu0 0.0
    %91 = vmatprep.subr.mxu0 0.0
    %92 = vmatpush1.msra.mxu0 0.0
    %93 = vmatprep.subr.mxu0 0.0
    %94 = vmatpush1.msra.mxu0 0.0
    %95 = vmatprep.mubr.f32.mxu0 0.0
    %96 = vmatmul.mubr.f32.gmra.mrb[0].mxu0 %v29
    %v97 = vpop.f32.mrb[0].mxu0
    %v98 = vadd.f32 %v25, %v97
    %v99 = vpop.f32.mrb[0].mxu0
    %100 = vdwg.mxu0
    %vm101 = vcmask 130048
    %102 = vst.msk [vmem:[#allocation2] sm:$0xff] %vm101, %v98
    // Predicated region
    $region14: #{tpu_custom_call.1} parent=1 // pred_check
      _
    $region15: #{tpu_custom_call.1} parent=1 // pred_check_branch
      %104 = sbr.rel (0) target = $region17
    $region16: #{tpu_custom_call.1} parent=1 // pred_region
      %s106 = ssub.s32 128, 128
      %107 = vsyncadd [#allocation3], %s106
      %s109 = sshll.u32 [#allocation2], 4
      %s110 = int_to_ptr.vmem [resolvable:$true] %s109
      %112 = dma.vmem_to_hbm [thread:$0]  %s110, 128, %s3, [#allocation3]
    $region17: #{tpu_custom_call.1} parent=1 // pred_fallthru
      _
    // Predicated region
    $region18: #{tpu_custom_call.1} parent=1 // pred_check
      _
    $region19: #{tpu_custom_call.1} parent=1 // pred_check_branch
      %114 = sbr.rel (0) target = $region21
    $region20: #{tpu_custom_call.1} parent=1 // pred_region
      %115 = dma.done [#allocation3], 128
    $region21: #{tpu_custom_call.1} parent=1 // pred_fallthru
      _
    %116 = vsyncpa [#allocation3], 1

</llo_original>
